<compile_context>
chip_gen: v6e
topology: v6e:2x2x1
jax: 0.10.0
libtpu: 0.0.40
codegen_flags: <defaults>
</compile_context>

<pallas_src>
import functools

import jax
import jax.numpy as jnp
from jax.experimental import pallas as pl
from jax.experimental.pallas import tpu as pltpu

_LANE = 128
_NUM_CLASS = 2
_PAD_UNIT = 16 * _LANE              # pad flat length to a multiple of 16 rows
_VMEM_BUDGET = 20 * 1024 * 1024     # double-buffered inputs + in-kernel temps
_TEMP_BYTES_PER_ROW = 3072          # conservative bool/bf16 intermediate estimate
_VMEM_LIMIT = 32 * 1024 * 1024      # safe on v5e/v6e (128 MiB) and v7x (64 MiB)
_MAX_BLOCK_ROWS = 16384


def _make_kernel(rows, block_rows, bpc, needs_row_mask):
    """Builds the kernel body with static tiling parameters baked in."""

    def kernel(pr_ref, gt_ref, out_ref):
        c = pl.program_id(0)
        i = pl.program_id(1)

        @pl.when(i == 0)
        def _init():
            out_ref[...] = jnp.zeros_like(out_ref)

        pr = pr_ref[...]                      # (block_rows, 128), original dtype
        gt = gt_ref[...]                      # (block_rows, 128), original dtype

        valid = (gt >= 0) & (gt < _NUM_CLASS)
        gt1 = valid & (gt == 1)               # cm[1,0] + cm[1,1]
        pr_is1 = pr == 1                      # pr assumed in {0, 1} (bincount spec)
        pr1 = valid & pr_is1                  # cm[0,1] + cm[1,1]
        inter = gt1 & pr_is1                  # cm[1,1]

        # Row-reduction weights for the MXU.  Out-of-range rows (ragged last
        # block / clamped duplicate blocks) get weight 0.0, so no per-element
        # tail mask is needed and garbage data contributes nothing.
        if needs_row_mask:
            row0 = (c * bpc + i) * block_rows
            rid = jax.lax.broadcasted_iota(jnp.int32, (8, block_rows), 1) + row0
            lhs = (rid < rows).astype(jnp.bfloat16)
        else:
            lhs = jnp.ones((8, block_rows), dtype=jnp.bfloat16)

        def col_counts(m):
            # (8, BR) @ (BR, 128) -> (8, 128) f32 per-lane column counts.
            # 0/1 bf16 inputs with f32 accumulation are exact for BR <= 2**24;
            # all 8 result rows are identical.
            return jnp.dot(
                lhs, m.astype(jnp.bfloat16),
                preferred_element_type=jnp.float32,
            ).astype(jnp.int32)

        # Three full-tile (8,128) accumulators inside the resident out block.
        out_ref[0, 0:8, :] += col_counts(gt1)
        out_ref[0, 8:16, :] += col_counts(pr1)
        out_ref[0, 16:24, :] += col_counts(inter)

    return kernel


@functools.partial(jax.jit, static_argnames=("block_rows",))
def yolop_iou_loss(pr, gt, block_rows=None):
    """Pallas equivalent of YOLOPIoULossV1.forward(pr, gt) -> class-1 IoU scalar."""
    assert pr.size == gt.size, "pr and gt must have the same number of elements"
    pr_f = pr.reshape(-1)
    gt_f = gt.reshape(-1)
    n = pr_f.shape[0]

    # Pad only when the flat length is ragged (common segmentation-map sizes
    # divide exactly, so the hot path touches HBM exactly once per input).
    n_pad = ((n + _PAD_UNIT - 1) // _PAD_UNIT) * _PAD_UNIT
    if n_pad != n:
        if gt_f.dtype == jnp.bool_:
            gt_f = gt_f.astype(jnp.int8)
        pr_f = jnp.pad(pr_f, (0, n_pad - n))                              # 0 -> pr != 1
        gt_f = jnp.pad(gt_f, (0, n_pad - n), constant_values=_NUM_CLASS)  # invalid label
    rows = n_pad // _LANE

    pr2 = pr_f.reshape(rows, _LANE)
    gt2 = gt_f.reshape(rows, _LANE)

    if block_rows is None:
        per_row = (2 * _LANE * (pr2.dtype.itemsize + gt2.dtype.itemsize)
                   + _TEMP_BYTES_PER_ROW)
        br = int(_VMEM_BUDGET // per_row)
        br = max(32, min(br, _MAX_BLOCK_ROWS))
        br = (br // 32) * 32
    else:
        br = max(8, (int(block_rows) // 8) * 8)
    br = min(br, rows)                      # single full-array block if it fits

    nb = pl.cdiv(rows, br)
    num_cores = 2 if nb >= 2 else 1         # TODO(synk): query actual TC count
    bpc = pl.cdiv(nb, num_cores)
    needs_row_mask = (num_cores * bpc * br) != rows

    kernel = _make_kernel(rows, br, bpc, needs_row_mask)
    in_index = lambda c, i: (jnp.minimum(c * bpc + i, nb - 1), 0)

    counts = pl.pallas_call(
        kernel,
        out_shape=jax.ShapeDtypeStruct((num_cores, 24, _LANE), jnp.int32),
        grid=(num_cores, bpc),
        in_specs=[
            pl.BlockSpec((br, _LANE), in_index),
            pl.BlockSpec((br, _LANE), in_index),
        ],
        out_specs=pl.BlockSpec((1, 24, _LANE), lambda c, i: (c, 0, 0)),
        compiler_params=pltpu.CompilerParams(
            dimension_semantics=("parallel", "arbitrary"),
            vmem_limit_bytes=_VMEM_LIMIT,
        ),
    )(pr2, gt2)

    # Tiny finalize: each (8,128) counter tile has 8 identical rows.
    n_gt1 = counts[:, 0, :].sum()
    n_pr1 = counts[:, 8, :].sum()
    n_int = counts[:, 16, :].sum()
    union = n_gt1 + n_pr1 - n_int
    return jnp.where(
        union == 0,
        jnp.float32(0.0),
        n_int.astype(jnp.float32) / union.astype(jnp.float32),
    )


def _reference_iou(pr, gt):
    """Plain-JAX reference mirroring the numpy code in the PyTorch module."""
    pr = pr.reshape(-1).astype(jnp.int32)
    gt = gt.reshape(-1).astype(jnp.int32)
    valid = (gt >= 0) & (gt < _NUM_CLASS)
    inter = jnp.sum(valid & (gt == 1) & (pr == 1))
    n_gt1 = jnp.sum(valid & (gt == 1))
    n_pr1 = jnp.sum(valid & (pr == 1))
    union = n_gt1 + n_pr1 - inter
    return jnp.where(
        union == 0,
        jnp.float32(0.0),
        inter.astype(jnp.float32) / union.astype(jnp.float32),
    )


if __name__ == "__main__":
    key = jax.random.PRNGKey(0)
    k1, k2, k3, k4 = jax.random.split(key, 4)

    # Case 1: small single-block path (ragged length -> pad path exercised).
    pr_a = jax.random.randint(k1, (2, 16, 16), 0, 2, dtype=jnp.int32)
    gt_a = jax.random.randint(k2, (2, 16, 16), -1, 3, dtype=jnp.int32)
    out_a = jax.block_until_ready(yolop_iou_loss(pr_a, gt_a))
    ref_a = jax.block_until_ready(_reference_iou(pr_a, gt_a))
    assert jnp.allclose(out_a, ref_a, atol=1e-6), (out_a, ref_a)

    # Case 2: forced tiny blocks -> 2-core grid, partial last block and a
    # clamped duplicate block (multi-block accumulate + tail-mask paths).
    pr_b = jax.random.randint(k3, (2, 40, 52), 0, 2, dtype=jnp.int32)
    gt_b = jax.random.randint(k4, (2, 40, 52), -1, 3, dtype=jnp.int32)
    out_b = jax.block_until_ready(yolop_iou_loss(pr_b, gt_b, block_rows=16))
    ref_b = jax.block_until_ready(_reference_iou(pr_b, gt_b))
    assert jnp.allclose(out_b, ref_b, atol=1e-6), (out_b, ref_b)

    print("KERNEL_OK")
</pallas_src>

<mosaic_0001>
module attributes {stable_mosaic.version = 11 : i64} {
  func.func @kernel(%arg0: i32, %arg1: i32, %arg2: memref<16x128xi32, #tpu.memory_space<vmem>>, %arg3: memref<16x128xi32, #tpu.memory_space<vmem>>, %arg4: memref<1x24x128xi32, #tpu.memory_space<vmem>>) attributes {dimension_semantics = [#tpu.dimension_semantics<parallel>, #tpu.dimension_semantics<arbitrary>], iteration_bounds = array<i64: 1, 1>, scalar_prefetch = 0 : i64, scratch_operands = 0 : i64, tpu.core_type = #tpu.core_type<tc>, window_params = [{transform_indices = @transform_0, window_bounds = array<i64: 16, 128>}, {transform_indices = @transform_1, window_bounds = array<i64: 16, 128>}, {transform_indices = @transform_2, window_bounds = array<i64: 1, 24, 128>}]} {
    %c0_i32 = arith.constant 0 : i32
    %0 = arith.cmpi eq, %arg1, %c0_i32 : i32
    %1 = arith.extui %0 : i1 to i32
    %c0_i32_0 = arith.constant 0 : i32
    %2 = arith.cmpi ne, %1, %c0_i32_0 : i32
    scf.if %2 {
      %c0_i32_25 = arith.constant 0 : i32
      %51 = vector.broadcast %c0_i32_25 : i32 to vector<1x24x128xi32>
      %c0_26 = arith.constant 0 : index
      %c0_27 = arith.constant 0 : index
      %c0_28 = arith.constant 0 : index
      %52 = vector.load %arg4[%c0_26, %c0_27, %c0_28] : memref<1x24x128xi32, #tpu.memory_space<vmem>>, vector<1x24x128xi32>
      tpu.vector_store %arg4[%c0_26, %c0_27, %c0_28], %51 {strides = array<i32>} : memref<1x24x128xi32, #tpu.memory_space<vmem>>, vector<1x24x128xi32>,
    } else {
    }
    %c0 = arith.constant 0 : index
    %c0_1 = arith.constant 0 : index
    %3 = vector.load %arg2[%c0, %c0_1] : memref<16x128xi32, #tpu.memory_space<vmem>>, vector<16x128xi32>
    %c0_2 = arith.constant 0 : index
    %c0_3 = arith.constant 0 : index
    %4 = vector.load %arg3[%c0_2, %c0_3] : memref<16x128xi32, #tpu.memory_space<vmem>>, vector<16x128xi32>
    %c0_i32_4 = arith.constant 0 : i32
    %5 = vector.broadcast %c0_i32_4 : i32 to vector<16x128xi32>
    %6 = arith.cmpi sge, %4, %5 : vector<16x128xi32>
    %c2_i32 = arith.constant 2 : i32
    %7 = vector.broadcast %c2_i32 : i32 to vector<16x128xi32>
    %8 = arith.cmpi slt, %4, %7 : vector<16x128xi32>
    %9 = arith.andi %6, %8 : vector<16x128xi1>
    %c1_i32 = arith.constant 1 : i32
    %10 = vector.broadcast %c1_i32 : i32 to vector<16x128xi32>
    %11 = arith.cmpi eq, %4, %10 : vector<16x128xi32>
    %12 = arith.andi %9, %11 : vector<16x128xi1>
    %c1_i32_5 = arith.constant 1 : i32
    %13 = vector.broadcast %c1_i32_5 : i32 to vector<16x128xi32>
    %14 = arith.cmpi eq, %3, %13 : vector<16x128xi32>
    %15 = arith.andi %9, %14 : vector<16x128xi1>
    %16 = arith.andi %12, %14 : vector<16x128xi1>
    %cst = arith.constant 1.000000e+00 : bf16
    %17 = vector.broadcast %cst : bf16 to vector<8x16xbf16>
    %c0_6 = arith.constant 0 : index
    %c0_7 = arith.constant 0 : index
    %c0_8 = arith.constant 0 : index
    %18 = vector.load %arg4[%c0_6, %c0_7, %c0_8] : memref<1x24x128xi32, #tpu.memory_space<vmem>>, vector<1x8x128xi32>
    %19 = vector.shape_cast %18 : vector<1x8x128xi32> to vector<8x128xi32>
    %20 = arith.extui %12 : vector<16x128xi1> to vector<16x128xi32>
    %21 = arith.sitofp %20 : vector<16x128xi32> to vector<16x128xf32>
    %22 = arith.truncf %21 : vector<16x128xf32> to vector<16x128xbf16>
    %cst_9 = arith.constant dense<0.000000e+00> : vector<8x128xf32>
    %23 = tpu.matmul %17, %22, %cst_9 {dimension_numbers = #tpu.dot_dimension_numbers<[1], [0], [0], [1], [0, 0, 1, 1], [], []>} : vector<8x16xbf16>, vector<16x128xbf16>, vector<8x128xf32> -> vector<8x128xf32>
    %24 = arith.fptosi %23 : vector<8x128xf32> to vector<8x128xi32>
    %25 = arith.addi %19, %24 : vector<8x128xi32>
    %c0_10 = arith.constant 0 : index
    %c0_11 = arith.constant 0 : index
    %c0_12 = arith.constant 0 : index
    %26 = vector.load %arg4[%c0_10, %c0_11, %c0_12] : memref<1x24x128xi32, #tpu.memory_space<vmem>>, vector<1x8x128xi32>
    %27 = vector.shape_cast %26 : vector<1x8x128xi32> to vector<8x128xi32>
    %28 = vector.shape_cast %25 : vector<8x128xi32> to vector<1x8x128xi32>
    tpu.vector_store %arg4[%c0_10, %c0_11, %c0_12], %28 {strides = array<i32>} : memref<1x24x128xi32, #tpu.memory_space<vmem>>, vector<1x8x128xi32>,
    %c0_13 = arith.constant 0 : index
    %c8 = arith.constant 8 : index
    %c0_14 = arith.constant 0 : index
    %29 = vector.load %arg4[%c0_13, %c8, %c0_14] : memref<1x24x128xi32, #tpu.memory_space<vmem>>, vector<1x8x128xi32>
    %30 = vector.shape_cast %29 : vector<1x8x128xi32> to vector<8x128xi32>
    %31 = arith.extui %15 : vector<16x128xi1> to vector<16x128xi32>
    %32 = arith.sitofp %31 : vector<16x128xi32> to vector<16x128xf32>
    %33 = arith.truncf %32 : vector<16x128xf32> to vector<16x128xbf16>
    %cst_15 = arith.constant dense<0.000000e+00> : vector<8x128xf32>
    %34 = tpu.matmul %17, %33, %cst_15 {dimension_numbers = #tpu.dot_dimension_numbers<[1], [0], [0], [1], [0, 0, 1, 1], [], []>} : vector<8x16xbf16>, vector<16x128xbf16>, vector<8x128xf32> -> vector<8x128xf32>
    %35 = arith.fptosi %34 : vector<8x128xf32> to vector<8x128xi32>
    %36 = arith.addi %30, %35 : vector<8x128xi32>
    %c0_16 = arith.constant 0 : index
    %c8_17 = arith.constant 8 : index
    %c0_18 = arith.constant 0 : index
    %37 = vector.load %arg4[%c0_16, %c8_17, %c0_18] : memref<1x24x128xi32, #tpu.memory_space<vmem>>, vector<1x8x128xi32>
    %38 = vector.shape_cast %37 : vector<1x8x128xi32> to vector<8x128xi32>
    %39 = vector.shape_cast %36 : vector<8x128xi32> to vector<1x8x128xi32>
    tpu.vector_store %arg4[%c0_16, %c8_17, %c0_18], %39 {strides = array<i32>} : memref<1x24x128xi32, #tpu.memory_space<vmem>>, vector<1x8x128xi32>,
    %c0_19 = arith.constant 0 : index
    %c16 = arith.constant 16 : index
    %c0_20 = arith.constant 0 : index
    %40 = vector.load %arg4[%c0_19, %c16, %c0_20] : memref<1x24x128xi32, #tpu.memory_space<vmem>>, vector<1x8x128xi32>
    %41 = vector.shape_cast %40 : vector<1x8x128xi32> to vector<8x128xi32>
    %42 = arith.extui %16 : vector<16x128xi1> to vector<16x128xi32>
    %43 = arith.sitofp %42 : vector<16x128xi32> to vector<16x128xf32>
    %44 = arith.truncf %43 : vector<16x128xf32> to vector<16x128xbf16>
    %cst_21 = arith.constant dense<0.000000e+00> : vector<8x128xf32>
    %45 = tpu.matmul %17, %44, %cst_21 {dimension_numbers = #tpu.dot_dimension_numbers<[1], [0], [0], [1], [0, 0, 1, 1], [], []>} : vector<8x16xbf16>, vector<16x128xbf16>, vector<8x128xf32> -> vector<8x128xf32>
    %46 = arith.fptosi %45 : vector<8x128xf32> to vector<8x128xi32>
    %47 = arith.addi %41, %46 : vector<8x128xi32>
    %c0_22 = arith.constant 0 : index
    %c16_23 = arith.constant 16 : index
    %c0_24 = arith.constant 0 : index
    %48 = vector.load %arg4[%c0_22, %c16_23, %c0_24] : memref<1x24x128xi32, #tpu.memory_space<vmem>>, vector<1x8x128xi32>
    %49 = vector.shape_cast %48 : vector<1x8x128xi32> to vector<8x128xi32>
    %50 = vector.shape_cast %47 : vector<8x128xi32> to vector<1x8x128xi32>
    tpu.vector_store %arg4[%c0_22, %c16_23, %c0_24], %50 {strides = array<i32>} : memref<1x24x128xi32, #tpu.memory_space<vmem>>, vector<1x8x128xi32>,
    return
  }
  func.func @transform_0(%arg0: i32, %arg1: i32) -> (i32, i32) {
    %c1_i32 = arith.constant 1 : i32
    %0 = arith.muli %arg0, %c1_i32 : i32
    %1 = arith.addi %0, %arg1 : i32
    %c0_i32 = arith.constant 0 : i32
    %2 = arith.minsi %1, %c0_i32 : i32
    %c0_i32_0 = arith.constant 0 : i32
    %c0_i32_1 = arith.constant 0 : i32
    return %2, %c0_i32_0 : i32, i32
  }
  func.func @transform_1(%arg0: i32, %arg1: i32) -> (i32, i32) {
    %c1_i32 = arith.constant 1 : i32
    %0 = arith.muli %arg0, %c1_i32 : i32
    %1 = arith.addi %0, %arg1 : i32
    %c0_i32 = arith.constant 0 : i32
    %2 = arith.minsi %1, %c0_i32 : i32
    %c0_i32_0 = arith.constant 0 : i32
    %c0_i32_1 = arith.constant 0 : i32
    return %2, %c0_i32_0 : i32, i32
  }
  func.func @transform_2(%arg0: i32, %arg1: i32) -> (i32, i32, i32) {
    %c0_i32 = arith.constant 0 : i32
    %c0_i32_0 = arith.constant 0 : i32
    %c0_i32_1 = arith.constant 0 : i32
    return %arg0, %c0_i32, %c0_i32_0 : i32, i32, i32
  }
}

</mosaic_0001>

<llo_original>
// kernel: yolop_iou_loss.1
$region0: #{yolop_iou_loss.1}
  #allocation0 [shape = 'u32[]', space=smem, size = 0x4, offset = 0x4, fixed_abs, tag = 'smem constant byte address 0x4 - core index']
  #allocation1 [shape = 'u32[144,128]{1,0:T(1,128)}', space=vmem, size = 0x12000, scoped, tag = 'internal scratch']
  %s0 = inlined_call_operand.vmem [shape: s32[16,128], index: 0, kind: input, shape index: {}]
  %s1 = inlined_call_operand.vmem [shape: s32[16,128], index: 1, kind: input, shape index: {}]
  %s2 = inlined_call_operand.vmem [shape: s32[1,24,128], index: 2, kind: output, shape index: {}]
  %s3 = sld [smem:[#allocation0]]
  $region22: #{yolop_iou_loss.1} parent=0
    _
  %s5 = ssub.s32 1, %s3
  %s6 = scalar_select 0, %s5, %s3
  // Predicated region
  $region2: #{yolop_iou_loss.1} parent=0 // pred_check
    _
  $region3: #{yolop_iou_loss.1} parent=0 // pred_check_branch
    %8 = sbr.rel (0) target = $region5
  $region4: #{yolop_iou_loss.1} parent=0 // pred_region
    %s9 = sadd.s32 0, 0
    %p10 = scmp.lt.s32.totalorder %s9, 0
    %s11 = scalar_select %p10, %s9, 0
    %s12 = smul.u32 2, %s11
    %p13 = scmp.lt.s32.totalorder %s12, 1
    %s14 = scalar_select %p13, %s12, 1
    %s15 = smul.addr %s14, 8
    %s16 = scalar_lea.vmem %s0, %s15
    %s17 = sadd.s32 0, 0
    %p18 = scmp.lt.s32.totalorder %s17, 0
    %s19 = scalar_select %p18, %s17, 0
    %s20 = smul.u32 2, %s19
  $region5: #{yolop_iou_loss.1} parent=0 // pred_fallthru
    _
  // Predicated region
  $region6: #{yolop_iou_loss.1} parent=0 // pred_check
    _
  $region7: #{yolop_iou_loss.1} parent=0 // pred_check_branch
    %22 = sbr.rel (0) target = $region9
  $region8: #{yolop_iou_loss.1} parent=0 // pred_region
    %s23 = sadd.s32 0, 0
    %p24 = scmp.lt.s32.totalorder %s23, 0
    %s25 = scalar_select %p24, %s23, 0
    %s26 = smul.u32 2, %s25
    %p27 = scmp.lt.s32.totalorder %s26, 1
    %s28 = scalar_select %p27, %s26, 1
    %s29 = smul.addr %s28, 8
    %s30 = scalar_lea.vmem %s1, %s29
    %s31 = sadd.s32 0, 0
    %p32 = scmp.lt.s32.totalorder %s31, 0
    %s33 = scalar_select %p32, %s31, 0
    %s34 = smul.u32 2, %s33
  $region9: #{yolop_iou_loss.1} parent=0 // pred_fallthru
    _
  %s35 = sadd.s32 0, 0
  %p36 = scmp.lt.s32.totalorder %s35, 0
  %s37 = scalar_select %p36, %s35, 0
  %s38 = smul.u32 2, %s37
  %p39 = scmp.lt.s32.totalorder %s38, 1
  %s40 = scalar_select %p39, %s38, 1
  %s41 = smul.addr %s40, 8
  %s42 = scalar_lea.vmem %s0, %s41
  %s43 = sadd.s32 0, 0
  %p44 = scmp.lt.s32.totalorder %s43, 0
  %s45 = scalar_select %p44, %s43, 0
  %s46 = smul.u32 2, %s45
  %p47 = scmp.lt.s32.totalorder %s46, 1
  %s48 = scalar_select %p47, %s46, 1
  %s49 = smul.addr %s48, 8
  %s50 = scalar_lea.vmem %s1, %s49
  %s51 = sadd.s32 0, 0
  %p52 = scmp.lt.s32.totalorder %s51, 0
  %s53 = scalar_select %p52, %s51, 0
  %s54 = smul.u32 2, %s53
  %p55 = scmp.lt.s32.totalorder %s54, 1
  %s56 = scalar_select %p55, %s54, 1
  %s57 = smul.addr %s56, 8
  %s58 = scalar_lea.vmem %s0, %s57
  %s59 = sadd.s32 0, 0
  %p60 = scmp.lt.s32.totalorder %s59, 0
  %s61 = scalar_select %p60, %s59, 0
  %s62 = smul.u32 2, %s61
  %s63 = sadd.s32 0, 0
  %p64 = scmp.lt.s32.totalorder %s63, 0
  %s65 = scalar_select %p64, %s63, 0
  %s66 = smul.u32 2, %s65
  %p67 = scmp.lt.s32.totalorder %s66, 1
  %s68 = scalar_select %p67, %s66, 1
  %s69 = smul.addr %s68, 8
  %s70 = scalar_lea.vmem %s1, %s69
  %s71 = sadd.s32 0, 0
  %p72 = scmp.lt.s32.totalorder %s71, 0
  %s73 = scalar_select %p72, %s71, 0
  %s74 = smul.u32 2, %s73
  %p77 = scmp.eq.s32.totalorder 0, 0
  // Predicated region
  $region10: #{yolop_iou_loss.1} parent=0 // pred_check
    %p78 = pneg %p77
  $region11: #{yolop_iou_loss.1} parent=0 // pred_check_branch
    %80 = sbr.rel (%p78) target = $region13
  $region12: #{yolop_iou_loss.1} parent=0 // pred_region
    %81 = vst [vmem:[%s2] sm:$0xff] 0
    %82 = vst [vmem:[%s2 + $0x8] sm:$0xff] 0
    %83 = vst [vmem:[%s2 + $0x10] sm:$0xff] 0
  $region13: #{yolop_iou_loss.1} parent=0 // pred_fallthru
    _
  %v84 = vld [vmem:[%s58] sm:$0xff]
  %v85 = vld [vmem:[%s58 + $0x8] sm:$0xff]
  %v86 = vld [vmem:[%s70] sm:$0xff]
  %v87 = vld [vmem:[%s70 + $0x8] sm:$0xff]
  %vm88 = vcmp.ge.s32.totalorder %v86, 0
  %vm89 = vcmp.ge.s32.totalorder %v87, 0
  %vm90 = vcmp.lt.s32.totalorder %v86, 2
  %vm91 = vcmp.lt.s32.totalorder %v87, 2
  %vm92 = vmand %vm88, %vm90
  %vm93 = vmand %vm89, %vm91
  %vm94 = vcmp.eq.s32.totalorder %v86, 1
  %vm95 = vcmp.eq.s32.totalorder %v87, 1
  %vm96 = vmand %vm92, %vm94
  %vm97 = vmand %vm93, %vm95
  %vm98 = vcmp.eq.s32.totalorder %v84, 1
  %vm99 = vcmp.eq.s32.totalorder %v85, 1
  %vm100 = vmand %vm92, %vm98
  %vm101 = vmand %vm93, %vm99
  %vm102 = vmand %vm96, %vm98
  %vm103 = vmand %vm97, %vm99
  %v104 = vld [vmem:[%s2] sm:$0xff]
  %v105 = vsel %vm96, 1, 0
  %v106 = vsel %vm97, 1, 0
  %v107 = vcvt.s32.f32 %v105
  %v108 = vcvt.s32.f32 %v106
  %v109 = vpack.c.bf16 %v108, %v107
  %vm110 = vcmask 130048
  %v112 = vsel %vm110, 1065369472, 0
  %114 = vmatprep.subr.bf16.mxu0 0
  %115 = vmatpush1.bf16.msra.mxu0 0
  %116 = vmatprep.subr.bf16.mxu0 0
  %117 = vmatpush1.bf16.msra.mxu0 0
  %118 = vmatprep.subr.bf16.mxu0 0
  %119 = vmatpush1.bf16.msra.mxu0 0
  %120 = vmatprep.subr.bf16.mxu0 0
  %121 = vmatpush1.bf16.msra.mxu0 0
  %122 = vmatprep.subr.bf16.mxu0 0
  %123 = vmatpush1.bf16.msra.mxu0 0
  %124 = vmatprep.subr.bf16.mxu0 0
  %125 = vmatpush1.bf16.msra.mxu0 0
  %126 = vmatprep.subr.bf16.mxu0 0
  %127 = vmatpush1.bf16.msra.mxu0 0
  %128 = vmatprep.subr.bf16.mxu0 0
  %129 = vmatpush1.bf16.msra.mxu0 %v109
  %130 = vmatprep.subr.bf16.mxu0 0
  %131 = vmatpush2.bf16.msra.mxu0 0
  %132 = vmatprep.subr.bf16.mxu0 0
  %133 = vmatpush2.bf16.msra.mxu0 0
  %134 = vmatprep.subr.bf16.mxu0 0
  %135 = vmatpush2.bf16.msra.mxu0 0
  %136 = vmatprep.subr.bf16.mxu0 0
  %137 = vmatpush2.bf16.msra.mxu0 0
  %138 = vmatprep.subr.bf16.mxu0 0
  %139 = vmatpush2.bf16.msra.mxu0 0
  %140 = vmatprep.subr.bf16.mxu0 0
  %141 = vmatpush2.bf16.msra.mxu0 0
  %142 = vmatprep.subr.bf16.mxu0 0
  %143 = vmatpush2.bf16.msra.mxu0 0
  %144 = vmatprep.subr.bf16.mxu0 0
  %145 = vmatpush2.bf16.msra.mxu0 0
  %146 = vmatprep.mubr.bf16.mxu0 0
  %147 = vmatmul.mubr.bf16.gmra.mxu0 %v112
  %v148 = vpop.f32.mrf.mxu0
  %v149 = vadd.f32 0.0, %v148
  %v150 = vpop.f32.mrf.mxu0
  %v151 = vpop.f32.mrf.mxu0
  %v152 = vpop.f32.mrf.mxu0
  %153 = vdwg.mxu0
  %v154 = vcvt.f32.s32.to.zero.pseudo %v149
  %v155 = vadd.s32 %v104, %v154
  %156 = vst [vmem:[%s2] sm:$0xff] %v155
  %v157 = vld [vmem:[%s2 + $0x8] sm:$0xff]
  %v158 = vsel %vm100, 1, 0
  %v159 = vsel %vm101, 1, 0
  %v160 = vcvt.s32.f32 %v158
  %v161 = vcvt.s32.f32 %v159
  %v162 = vpack.c.bf16 %v161, %v160
  %163 = vmatprep.subr.bf16.mxu0 0
  %164 = vmatpush1.bf16.msra.mxu0 0
  %165 = vmatprep.subr.bf16.mxu0 0
  %166 = vmatpush1.bf16.msra.mxu0 0
  %167 = vmatprep.subr.bf16.mxu0 0
  %168 = vmatpush1.bf16.msra.mxu0 0
  %169 = vmatprep.subr.bf16.mxu0 0
  %170 = vmatpush1.bf16.msra.mxu0 0
  %171 = vmatprep.subr.bf16.mxu0 0
  %172 = vmatpush1.bf16.msra.mxu0 0
  %173 = vmatprep.subr.bf16.mxu0 0
  %174 = vmatpush1.bf16.msra.mxu0 0
  %175 = vmatprep.subr.bf16.mxu0 0
  %176 = vmatpush1.bf16.msra.mxu0 0
  %177 = vmatprep.subr.bf16.mxu0 0
  %178 = vmatpush1.bf16.msra.mxu0 %v162
  %179 = vmatprep.subr.bf16.mxu0 0
  %180 = vmatpush2.bf16.msra.mxu0 0
  %181 = vmatprep.subr.bf16.mxu0 0
  %182 = vmatpush2.bf16.msra.mxu0 0
  %183 = vmatprep.subr.bf16.mxu0 0
  %184 = vmatpush2.bf16.msra.mxu0 0
  %185 = vmatprep.subr.bf16.mxu0 0
  %186 = vmatpush2.bf16.msra.mxu0 0
  %187 = vmatprep.subr.bf16.mxu0 0
  %188 = vmatpush2.bf16.msra.mxu0 0
  %189 = vmatprep.subr.bf16.mxu0 0
  %190 = vmatpush2.bf16.msra.mxu0 0
  %191 = vmatprep.subr.bf16.mxu0 0
  %192 = vmatpush2.bf16.msra.mxu0 0
  %193 = vmatprep.subr.bf16.mxu0 0
  %194 = vmatpush2.bf16.msra.mxu0 0
  %195 = vmatprep.mubr.bf16.mxu0 0
  %196 = vmatmul.mubr.bf16.gmra.mxu0 %v112
  %v197 = vpop.f32.mrf.mxu0
  %v198 = vadd.f32 0.0, %v197
  %v199 = vpop.f32.mrf.mxu0
  %v200 = vpop.f32.mrf.mxu0
  %v201 = vpop.f32.mrf.mxu0
  %202 = vdwg.mxu0
  %v203 = vcvt.f32.s32.to.zero.pseudo %v198
  %v204 = vadd.s32 %v157, %v203
  %205 = vst [vmem:[%s2 + $0x8] sm:$0xff] %v204
  %v206 = vld [vmem:[%s2 + $0x10] sm:$0xff]
  %v207 = vsel %vm102, 1, 0
  %v208 = vsel %vm103, 1, 0
  %v209 = vcvt.s32.f32 %v207
  %v210 = vcvt.s32.f32 %v208
  %v211 = vpack.c.bf16 %v210, %v209
  %212 = vmatprep.subr.bf16.mxu0 0
  %213 = vmatpush1.bf16.msra.mxu0 0
  %214 = vmatprep.subr.bf16.mxu0 0
  %215 = vmatpush1.bf16.msra.mxu0 0
  %216 = vmatprep.subr.bf16.mxu0 0
  %217 = vmatpush1.bf16.msra.mxu0 0
  %218 = vmatprep.subr.bf16.mxu0 0
  %219 = vmatpush1.bf16.msra.mxu0 0
  %220 = vmatprep.subr.bf16.mxu0 0
  %221 = vmatpush1.bf16.msra.mxu0 0
  %222 = vmatprep.subr.bf16.mxu0 0
  %223 = vmatpush1.bf16.msra.mxu0 0
  %224 = vmatprep.subr.bf16.mxu0 0
  %225 = vmatpush1.bf16.msra.mxu0 0
  %226 = vmatprep.subr.bf16.mxu0 0
  %227 = vmatpush1.bf16.msra.mxu0 %v211
  %228 = vmatprep.subr.bf16.mxu0 0
  %229 = vmatpush2.bf16.msra.mxu0 0
  %230 = vmatprep.subr.bf16.mxu0 0
  %231 = vmatpush2.bf16.msra.mxu0 0
  %232 = vmatprep.subr.bf16.mxu0 0
  %233 = vmatpush2.bf16.msra.mxu0 0
  %234 = vmatprep.subr.bf16.mxu0 0
  %235 = vmatpush2.bf16.msra.mxu0 0
  %236 = vmatprep.subr.bf16.mxu0 0
  %237 = vmatpush2.bf16.msra.mxu0 0
  %238 = vmatprep.subr.bf16.mxu0 0
  %239 = vmatpush2.bf16.msra.mxu0 0
  %240 = vmatprep.subr.bf16.mxu0 0
  %241 = vmatpush2.bf16.msra.mxu0 0
  %242 = vmatprep.subr.bf16.mxu0 0
  %243 = vmatpush2.bf16.msra.mxu0 0
  %244 = vmatprep.mubr.bf16.mxu0 0
  %245 = vmatmul.mubr.bf16.gmra.mxu0 %v112
  %v246 = vpop.f32.mrf.mxu0
  %v247 = vadd.f32 0.0, %v246
  %v248 = vpop.f32.mrf.mxu0
  %v249 = vpop.f32.mrf.mxu0
  %v250 = vpop.f32.mrf.mxu0
  %251 = vdwg.mxu0
  %v252 = vcvt.f32.s32.to.zero.pseudo %v247
  %v253 = vadd.s32 %v206, %v252
  %254 = vst [vmem:[%s2 + $0x10] sm:$0xff] %v253
  // Predicated region
  $region14: #{yolop_iou_loss.1} parent=0 // pred_check
    _
  $region15: #{yolop_iou_loss.1} parent=0 // pred_check_branch
    %256 = sbr.rel (0) target = $region17
  $region16: #{yolop_iou_loss.1} parent=0 // pred_region
    _
  $region17: #{yolop_iou_loss.1} parent=0 // pred_fallthru
    _
  // Predicated region
  $region18: #{yolop_iou_loss.1} parent=0 // pred_check
    _
  $region19: #{yolop_iou_loss.1} parent=0 // pred_check_branch
    %258 = sbr.rel (0) target = $region21
  $region20: #{yolop_iou_loss.1} parent=0 // pred_region
    _
  $region21: #{yolop_iou_loss.1} parent=0 // pred_fallthru
    _

</llo_original>
